<compile_context>
chip_gen: v7x
topology: tpu7x:2x2x1
jax: 0.10.0
libtpu: 0.0.40
codegen_flags: <defaults>
</compile_context>

<pallas_src>
import jax
import jax.numpy as jnp
from jax.experimental import pallas as pl
from jax.experimental.pallas import tpu as pltpu


_BATCH_TILE = 16  # problems per grid step; keeps TB*N rows sublane-aligned for any N


def attention_kernel(neighs_ref, nodes_ref,
                     w1a_ref, w1b_ref, b1_ref,
                     w2_ref, b2_ref, w3_ref,
                     out_ref):
    """One grid step = TB independent attention problems, N neighbors each.

    neighs_ref       : [TB*N, D]  (problems stacked along sublanes)
    nodes_ref        : [TB, D]    (one center node per problem)
    w1a / w1b / w2   : [D, D]     (Linear weights, [in, out] layout)
    b1 / b2 / w3     : [1, D]
    out_ref          : [TB, N]    (row b = softmax over problem b's neighbors)
    """
    tb, n = out_ref.shape
    rows, d = neighs_ref.shape

    # att1 node path: PyTorch's node.repeat(num_neighs, 1) is folded into a
    # per-problem matmul ([TB, D] rows instead of [TB*N, D]) + broadcast-add.
    node_h = jnp.dot(nodes_ref[...], w1b_ref[...],
                     preferred_element_type=jnp.float32) + b1_ref[...]    # [TB, D]

    # att1 neighbor path:
    #   cat(neighs, node_rep) @ W1 + b1 == neighs @ W1a + node @ W1b + b1
    h1 = jnp.dot(neighs_ref[...], w1a_ref[...],
                 preferred_element_type=jnp.float32)                      # [TB*N, D]
    h1 = h1.reshape(tb, n, d) + node_h[:, None, :]
    h1 = jnp.maximum(h1, 0.0).reshape(rows, d)
    # dropout (eval mode) -> identity

    # att2
    h2 = jnp.dot(h1, w2_ref[...], preferred_element_type=jnp.float32) + b2_ref[...]
    h2 = jnp.maximum(h2, 0.0)
    # dropout (eval mode) -> identity

    # att3: D -> 1 projection.  A 1-output-column MXU matmul wastes a full
    # push/pop, so do it on the VPU (multiply) + XLU (lane reduce) instead.
    prod = h2 * w3_ref[...]                                               # [TB*N, D]
    logits = jnp.sum(prod.reshape(tb, n, d), axis=-1)                     # [TB, N]
    # att3 bias omitted: adding a constant is softmax-invariant.

    # softmax over the N neighbors of each problem (dim 0 of the original [N, 1])
    m = jnp.max(logits, axis=-1, keepdims=True)
    e = jnp.exp(logits - m)
    denom = jnp.sum(e, axis=-1, keepdims=True)
    out_ref[...] = e * pl.reciprocal(denom, approx=True)


@jax.jit
def sian_attention_batched(nodes, neighs, params):
    """Batched SIAN attention.

    nodes : [B, D] f32     one center-node embedding per problem
    neighs: [B, N, D] f32  N neighbor embeddings per problem
    returns att: [B, N] f32; each row is the softmax over that problem's N
    neighbors (== softmax over dim 0 of the original [N, 1] output).
    """
    B, N, D = neighs.shape
    w1a, w1b, b1, w2, b2, w3, b3 = params
    del b3  # adding a constant before softmax does not change the output

    # Pad the batch to a multiple of the batch tile.
    TB = _BATCH_TILE
    Bp = ((B + TB - 1) // TB) * TB
    if Bp != B:
        nodes = jnp.concatenate(
            [nodes, jnp.zeros((Bp - B, D), nodes.dtype)], axis=0)
        neighs = jnp.concatenate(
            [neighs, jnp.zeros((Bp - B, N, D), neighs.dtype)], axis=0)

    neighs2d = neighs.reshape(Bp * N, D)    # problems stacked along sublanes
    w3_row = w3.reshape(1, D)               # att3 weight as a row for the VPU reduce

    rows = TB * N
    grid = (Bp // TB,)

    const = lambda r, c: pl.BlockSpec((r, c), lambda i: (0, 0))   # fetched once

    out = pl.pallas_call(
        attention_kernel,
        out_shape=jax.ShapeDtypeStruct((Bp, N), jnp.float32),
        grid=grid,
        in_specs=[
            pl.BlockSpec((rows, D), lambda i: (i, 0)),   # neighbors (TB problems)
            pl.BlockSpec((TB, D), lambda i: (i, 0)),     # center nodes
            const(D, D),                                 # w1a (neighbor half of att1)
            const(D, D),                                 # w1b (node half of att1)
            const(1, D),                                 # b1
            const(D, D),                                 # w2
            const(1, D),                                 # b2
            const(1, D),                                 # w3 (row form)
        ],
        out_specs=pl.BlockSpec((TB, N), lambda i: (i, 0)),
        compiler_params=pltpu.CompilerParams(
            dimension_semantics=("parallel",)),          # v7x: 2 TCs share the batch
    )(neighs2d, nodes, w1a, w1b, b1, w2, b2, w3_row)

    return out[:B]


def sian_attention(node, neighs, params):
    """Single-problem API mirroring the PyTorch forward: node [1, D], neighs [N, D] -> [N, 1]."""
    att = sian_attention_batched(node, neighs[None], params)   # [1, N]
    return att[0, :, None]


def init_params(key, embed_dim):
    """Deterministic init mimicking nn.Linear default (uniform +-1/sqrt(fan_in)).
    Weights stored as [in, out] (transposed vs. PyTorch), so y = x @ W + b."""
    D = embed_dim
    ks = jax.random.split(key, 6)

    def lin(kw, kb, fan_in, fan_out):
        bound = 1.0 / jnp.sqrt(float(fan_in))
        w = jax.random.uniform(kw, (fan_in, fan_out), jnp.float32, -bound, bound)
        b = jax.random.uniform(kb, (1, fan_out), jnp.float32, -bound, bound)
        return w, b

    w1, b1 = lin(ks[0], ks[1], 2 * D, D)   # att1: Linear(2D, D)
    w2, b2 = lin(ks[2], ks[3], D, D)       # att2: Linear(D, D)
    w3, b3 = lin(ks[4], ks[5], D, 1)       # att3: Linear(D, 1)

    w1a = w1[:D, :]    # applied to neighs
    w1b = w1[D:, :]    # applied to node (cat order: (neighs, node))
    return (w1a, w1b, b1, w2, b2, w3, b3)


def reference_single(node_vec, neighs, params):
    """Pure-JAX forward with the exact PyTorch semantics (eval mode)."""
    w1a, w1b, b1, w2, b2, w3, b3 = params
    x = jnp.maximum(neighs @ w1a + node_vec @ w1b + b1, 0.0)
    x = jnp.maximum(x @ w2 + b2, 0.0)
    logits = x @ w3 + b3                    # [N, 1]
    return jax.nn.softmax(logits, axis=0)[:, 0]


if __name__ == "__main__":
    embed_dim = 32
    num_neighs = 8
    batch = 16

    key = jax.random.PRNGKey(0)
    k_nodes, k_neighs, k_params = jax.random.split(key, 3)

    nodes = jax.random.normal(k_nodes, (batch, embed_dim), jnp.float32)
    neighs = jax.random.normal(k_neighs, (batch, num_neighs, embed_dim), jnp.float32)
    params = init_params(k_params, embed_dim)

    att = sian_attention_batched(nodes, neighs, params)
    att = jax.block_until_ready(att)
    assert att.shape == (batch, num_neighs)

    # each row is a softmax over that problem's neighbors -> sums to 1
    assert jnp.allclose(jnp.sum(att, axis=-1), 1.0, atol=3e-3)

    # matches the exact PyTorch-semantics forward (pure-JAX reference)
    ref = jax.vmap(lambda nd, nb: reference_single(nd, nb, params))(nodes, neighs)
    assert jnp.allclose(att, ref, atol=5e-3), float(jnp.max(jnp.abs(att - ref)))

    # single-problem API identical to the PyTorch module's forward shape contract
    att1 = sian_attention(nodes[:1], neighs[0], params)
    att1 = jax.block_until_ready(att1)
    assert att1.shape == (num_neighs, 1)
    assert jnp.allclose(att1[:, 0], ref[0], atol=5e-3)

    print("KERNEL_OK")
</pallas_src>

<mosaic_0001>
module attributes {stable_mosaic.version = 11 : i64} {
  func.func @attention_kernel(%arg0: i32, %arg1: memref<128x32xf32, #tpu.memory_space<vmem>>, %arg2: memref<16x32xf32, #tpu.memory_space<vmem>>, %arg3: memref<32x32xf32, #tpu.memory_space<vmem>>, %arg4: memref<32x32xf32, #tpu.memory_space<vmem>>, %arg5: memref<1x32xf32, #tpu.memory_space<vmem>>, %arg6: memref<32x32xf32, #tpu.memory_space<vmem>>, %arg7: memref<1x32xf32, #tpu.memory_space<vmem>>, %arg8: memref<1x32xf32, #tpu.memory_space<vmem>>, %arg9: memref<16x8xf32, #tpu.memory_space<vmem>>) attributes {dimension_semantics = [#tpu.dimension_semantics<parallel>], iteration_bounds = array<i64: 1>, scalar_prefetch = 0 : i64, scratch_operands = 0 : i64, tpu.core_type = #tpu.core_type<tc>, window_params = [{transform_indices = @transform_0, window_bounds = array<i64: 128, 32>}, {transform_indices = @transform_1, window_bounds = array<i64: 16, 32>}, {pipeline_mode = #tpu.pipeline_mode<synchronous>, transform_indices = @transform_2, window_bounds = array<i64: 32, 32>}, {pipeline_mode = #tpu.pipeline_mode<synchronous>, transform_indices = @transform_3, window_bounds = array<i64: 32, 32>}, {pipeline_mode = #tpu.pipeline_mode<synchronous>, transform_indices = @transform_4, window_bounds = array<i64: 1, 32>}, {pipeline_mode = #tpu.pipeline_mode<synchronous>, transform_indices = @transform_5, window_bounds = array<i64: 32, 32>}, {pipeline_mode = #tpu.pipeline_mode<synchronous>, transform_indices = @transform_6, window_bounds = array<i64: 1, 32>}, {pipeline_mode = #tpu.pipeline_mode<synchronous>, transform_indices = @transform_7, window_bounds = array<i64: 1, 32>}, {transform_indices = @transform_8, window_bounds = array<i64: 16, 8>}]} {
    %c0 = arith.constant 0 : index
    %c0_0 = arith.constant 0 : index
    %0 = vector.load %arg2[%c0, %c0_0] : memref<16x32xf32, #tpu.memory_space<vmem>>, vector<16x32xf32>
    %c0_1 = arith.constant 0 : index
    %c0_2 = arith.constant 0 : index
    %1 = vector.load %arg4[%c0_1, %c0_2] : memref<32x32xf32, #tpu.memory_space<vmem>>, vector<32x32xf32>
    %cst = arith.constant dense<0.000000e+00> : vector<16x32xf32>
    %2 = tpu.matmul %0, %1, %cst {dimension_numbers = #tpu.dot_dimension_numbers<[1], [0], [0], [1], [0, 0, 1, 1], [], []>} : vector<16x32xf32>, vector<32x32xf32>, vector<16x32xf32> -> vector<16x32xf32>
    %c0_3 = arith.constant 0 : index
    %c0_4 = arith.constant 0 : index
    %3 = vector.load %arg5[%c0_3, %c0_4] : memref<1x32xf32, #tpu.memory_space<vmem>>, vector<1x32xf32>
    %4 = vector.broadcast %3 : vector<1x32xf32> to vector<16x32xf32>
    %5 = arith.addf %2, %4 : vector<16x32xf32>
    %c0_5 = arith.constant 0 : index
    %c0_6 = arith.constant 0 : index
    %6 = vector.load %arg1[%c0_5, %c0_6] : memref<128x32xf32, #tpu.memory_space<vmem>>, vector<128x32xf32>
    %c0_7 = arith.constant 0 : index
    %c0_8 = arith.constant 0 : index
    %7 = vector.load %arg3[%c0_7, %c0_8] : memref<32x32xf32, #tpu.memory_space<vmem>>, vector<32x32xf32>
    %cst_9 = arith.constant dense<0.000000e+00> : vector<128x32xf32>
    %8 = tpu.matmul %6, %7, %cst_9 {dimension_numbers = #tpu.dot_dimension_numbers<[1], [0], [0], [1], [0, 0, 1, 1], [], []>} : vector<128x32xf32>, vector<32x32xf32>, vector<128x32xf32> -> vector<128x32xf32>
    %9 = vector.shape_cast %8 : vector<128x32xf32> to vector<16x8x32xf32>
    %10 = vector.shape_cast %5 : vector<16x32xf32> to vector<16x1x32xf32>
    %11 = vector.broadcast %10 : vector<16x1x32xf32> to vector<16x8x32xf32>
    %12 = arith.addf %9, %11 : vector<16x8x32xf32>
    %cst_10 = arith.constant 0.000000e+00 : f32
    %13 = vector.broadcast %cst_10 : f32 to vector<16x8x32xf32>
    %14 = arith.maximumf %12, %13 : vector<16x8x32xf32>
    %15 = vector.shape_cast %14 : vector<16x8x32xf32> to vector<128x32xf32>
    %c0_11 = arith.constant 0 : index
    %c0_12 = arith.constant 0 : index
    %16 = vector.load %arg6[%c0_11, %c0_12] : memref<32x32xf32, #tpu.memory_space<vmem>>, vector<32x32xf32>
    %cst_13 = arith.constant dense<0.000000e+00> : vector<128x32xf32>
    %17 = tpu.matmul %15, %16, %cst_13 {dimension_numbers = #tpu.dot_dimension_numbers<[1], [0], [0], [1], [0, 0, 1, 1], [], []>} : vector<128x32xf32>, vector<32x32xf32>, vector<128x32xf32> -> vector<128x32xf32>
    %c0_14 = arith.constant 0 : index
    %c0_15 = arith.constant 0 : index
    %18 = vector.load %arg7[%c0_14, %c0_15] : memref<1x32xf32, #tpu.memory_space<vmem>>, vector<1x32xf32>
    %19 = vector.broadcast %18 : vector<1x32xf32> to vector<128x32xf32>
    %20 = arith.addf %17, %19 : vector<128x32xf32>
    %cst_16 = arith.constant 0.000000e+00 : f32
    %21 = vector.broadcast %cst_16 : f32 to vector<128x32xf32>
    %22 = arith.maximumf %20, %21 : vector<128x32xf32>
    %c0_17 = arith.constant 0 : index
    %c0_18 = arith.constant 0 : index
    %23 = vector.load %arg8[%c0_17, %c0_18] : memref<1x32xf32, #tpu.memory_space<vmem>>, vector<1x32xf32>
    %24 = vector.broadcast %23 : vector<1x32xf32> to vector<128x32xf32>
    %25 = arith.mulf %22, %24 : vector<128x32xf32>
    %26 = vector.shape_cast %25 : vector<128x32xf32> to vector<16x8x32xf32>
    %cst_19 = arith.constant dense<0.000000e+00> : vector<16x8xf32>
    %27 = vector.multi_reduction <add>, %26, %cst_19 [2] : vector<16x8x32xf32> to vector<16x8xf32>
    %cst_20 = arith.constant dense<0xFF800000> : vector<16xf32>
    %28 = vector.multi_reduction <maximumf>, %27, %cst_20 [1] : vector<16x8xf32> to vector<16xf32>
    %29 = vector.shape_cast %28 : vector<16xf32> to vector<16x1xf32>
    %30 = vector.broadcast %29 : vector<16x1xf32> to vector<16x8xf32>
    %31 = arith.subf %27, %30 : vector<16x8xf32>
    %32 = math.exp %31 : vector<16x8xf32>
    %cst_21 = arith.constant dense<0.000000e+00> : vector<16xf32>
    %33 = vector.multi_reduction <add>, %32, %cst_21 [1] : vector<16x8xf32> to vector<16xf32>
    %34 = vector.shape_cast %33 : vector<16xf32> to vector<16x1xf32>
    %35 = tpu.reciprocal %34 {approx = true} : vector<16x1xf32> -> vector<16x1xf32>
    %36 = vector.broadcast %35 : vector<16x1xf32> to vector<16x8xf32>
    %37 = arith.mulf %32, %36 : vector<16x8xf32>
    %c0_22 = arith.constant 0 : index
    %c0_23 = arith.constant 0 : index
    %38 = vector.load %arg9[%c0_22, %c0_23] : memref<16x8xf32, #tpu.memory_space<vmem>>, vector<16x8xf32>
    tpu.vector_store %arg9[%c0_22, %c0_23], %37 {strides = array<i32>} : memref<16x8xf32, #tpu.memory_space<vmem>>, vector<16x8xf32>,
    return
  }
  func.func @transform_0(%arg0: i32) -> (i32, i32) {
    %c0_i32 = arith.constant 0 : i32
    %c0_i32_0 = arith.constant 0 : i32
    return %arg0, %c0_i32 : i32, i32
  }
  func.func @transform_1(%arg0: i32) -> (i32, i32) {
    %c0_i32 = arith.constant 0 : i32
    %c0_i32_0 = arith.constant 0 : i32
    return %arg0, %c0_i32 : i32, i32
  }
  func.func @transform_2(%arg0: i32) -> (i32, i32) {
    %c0_i32 = arith.constant 0 : i32
    %c0_i32_0 = arith.constant 0 : i32
    %c0_i32_1 = arith.constant 0 : i32
    return %c0_i32, %c0_i32_0 : i32, i32
  }
  func.func @transform_3(%arg0: i32) -> (i32, i32) {
    %c0_i32 = arith.constant 0 : i32
    %c0_i32_0 = arith.constant 0 : i32
    %c0_i32_1 = arith.constant 0 : i32
    return %c0_i32, %c0_i32_0 : i32, i32
  }
  func.func @transform_4(%arg0: i32) -> (i32, i32) {
    %c0_i32 = arith.constant 0 : i32
    %c0_i32_0 = arith.constant 0 : i32
    %c0_i32_1 = arith.constant 0 : i32
    return %c0_i32, %c0_i32_0 : i32, i32
  }
  func.func @transform_5(%arg0: i32) -> (i32, i32) {
    %c0_i32 = arith.constant 0 : i32
    %c0_i32_0 = arith.constant 0 : i32
    %c0_i32_1 = arith.constant 0 : i32
    return %c0_i32, %c0_i32_0 : i32, i32
  }
  func.func @transform_6(%arg0: i32) -> (i32, i32) {
    %c0_i32 = arith.constant 0 : i32
    %c0_i32_0 = arith.constant 0 : i32
    %c0_i32_1 = arith.constant 0 : i32
    return %c0_i32, %c0_i32_0 : i32, i32
  }
  func.func @transform_7(%arg0: i32) -> (i32, i32) {
    %c0_i32 = arith.constant 0 : i32
    %c0_i32_0 = arith.constant 0 : i32
    %c0_i32_1 = arith.constant 0 : i32
    return %c0_i32, %c0_i32_0 : i32, i32
  }
  func.func @transform_8(%arg0: i32) -> (i32, i32) {
    %c0_i32 = arith.constant 0 : i32
    %c0_i32_0 = arith.constant 0 : i32
    return %arg0, %c0_i32 : i32, i32
  }
}

</mosaic_0001>

<llo_original>
// kernel: sian_attention_batched.1
$region0: #{sian_attention_batched.1}
  #allocation0 [shape = 'u32[]', space=smem, size = 0x4, offset = 0x4, fixed_abs, tag = 'smem constant byte address 0x4 - core index']
  #allocation1 [shape = 'u32[144,128]{1,0:T(1,128)}', space=vmem, size = 0x12000, scoped, tag = 'internal scratch']
  %s0 = inlined_call_operand.hbm [shape: f32[128,32], index: 0, kind: input, shape index: {}]
  %s1 = inlined_call_operand.hbm [shape: f32[16,32], index: 1, kind: input, shape index: {}]
  %s2 = inlined_call_operand.hbm [shape: f32[32,32], index: 2, kind: input, shape index: {}]
  %s3 = inlined_call_operand.hbm [shape: f32[32,32], index: 3, kind: input, shape index: {}]
  %s4 = inlined_call_operand.vmem [shape: f32[1,32], index: 4, kind: input, shape index: {}]
  %s5 = inlined_call_operand.hbm [shape: f32[32,32], index: 5, kind: input, shape index: {}]
  %s6 = inlined_call_operand.vmem [shape: f32[1,32], index: 6, kind: input, shape index: {}]
  %s7 = inlined_call_operand.vmem [shape: f32[1,32], index: 7, kind: input, shape index: {}]
  %s8 = inlined_call_operand.vmem [shape: f32[16,8], index: 8, kind: output, shape index: {}]
  %s9 = sld [smem:[#allocation0]]
  $region62: #{sian_attention_batched.1} parent=0
    _
  %s11 = ssub.s32 1, %s9
  %s12 = scalar_select 0, %s11, %s9
  $region1: #{sian_attention_batched.1} parent=0
    #allocation2 [shape = 'u8[65536]{0}', space=vmem, size = 0x10000, scoped, tag = 'input window, operand 0, single buffered']
    #allocation3 [shape = 's32[1]{0}', space=sflag, size = 0x4, scoped, tag = 'scoped memory for sian_attention_batched.1']
    #allocation4 [shape = 'u8[8192]{0}', space=vmem, size = 0x2000, scoped, tag = 'input window, operand 1, single buffered']
    #allocation5 [shape = 's32[1]{0}', space=sflag, size = 0x4, scoped, tag = 'scoped memory for sian_attention_batched.1']
    #allocation6 [shape = 'u8[16384]{0}', space=vmem, size = 0x4000, scoped, tag = 'input window, operand 2, single buffered']
    #allocation7 [shape = 'u8[16384]{0}', space=vmem, size = 0x4000, scoped, tag = 'input window, operand 3, single buffered']
    #allocation8 [shape = 's32[1]{0}', space=sflag, size = 0x4, scoped, tag = 'scoped memory for sian_attention_batched.1']
    #allocation9 [shape = 'u8[16384]{0}', space=vmem, size = 0x4000, scoped, tag = 'input window, operand 5, single buffered']
    %13 = vsyncpa [#allocation3], 0
    %14 = vsyncpa [#allocation5], 0
    %15 = vsyncpa [#allocation8], 0
    // Predicated region
    $region2: #{sian_attention_batched.1} parent=1 // pred_check
      _
    $region3: #{sian_attention_batched.1} parent=1 // pred_check_branch
      %17 = sbr.rel (0) target = $region5
    $region4: #{sian_attention_batched.1} parent=1 // pred_region
      %s19 = ssub.s32 2048, 2048
      %20 = vsyncadd [#allocation3], %s19
      %s21 = sshll.u32 [#allocation2], 4
      %s22 = int_to_ptr.vmem [resolvable:$true] %s21
      %27 = dma.hbm_to_vmem [thread:$0]  %s0, 2048, %s22, [#allocation3], 128, 128, 8
    $region5: #{sian_attention_batched.1} parent=1 // pred_fallthru
      _
    // Predicated region
    $region6: #{sian_attention_batched.1} parent=1 // pred_check
      _
    $region7: #{sian_attention_batched.1} parent=1 // pred_check_branch
      %29 = sbr.rel (0) target = $region9
    $region8: #{sian_attention_batched.1} parent=1 // pred_region
      %s31 = ssub.s32 256, 256
      %32 = vsyncadd [#allocation5], %s31
      %s33 = sshll.u32 [#allocation4], 4
      %s34 = int_to_ptr.vmem [resolvable:$true] %s33
      %39 = dma.hbm_to_vmem [thread:$0]  %s1, 256, %s34, [#allocation5], 128, 128, 8
    $region9: #{sian_attention_batched.1} parent=1 // pred_fallthru
      _
    // Predicated region
    $region10: #{sian_attention_batched.1} parent=1 // pred_check
      _
    $region11: #{sian_attention_batched.1} parent=1 // pred_check_branch
      %41 = sbr.rel (0) target = $region13
    $region12: #{sian_attention_batched.1} parent=1 // pred_region
      %s43 = ssub.s32 512, 512
      %44 = vsyncadd [#allocation5], %s43
      %s45 = sshll.u32 [#allocation6], 4
      %s46 = int_to_ptr.vmem [resolvable:$true] %s45
      %51 = dma.hbm_to_vmem [thread:$0]  %s2, 512, %s46, [#allocation5], 128, 128, 8
    $region13: #{sian_attention_batched.1} parent=1 // pred_fallthru
      _
    // Predicated region
    $region14: #{sian_attention_batched.1} parent=1 // pred_check
      _
    $region15: #{sian_attention_batched.1} parent=1 // pred_check_branch
      %53 = sbr.rel (0) target = $region17
    $region16: #{sian_attention_batched.1} parent=1 // pred_region
      %s55 = ssub.s32 512, 512
      %56 = vsyncadd [#allocation8], %s55
      %s57 = sshll.u32 [#allocation7], 4
      %s58 = int_to_ptr.vmem [resolvable:$true] %s57
      %63 = dma.hbm_to_vmem [thread:$0]  %s3, 512, %s58, [#allocation8], 128, 128, 8
    $region17: #{sian_attention_batched.1} parent=1 // pred_fallthru
      _
    // Predicated region
    $region18: #{sian_attention_batched.1} parent=1 // pred_check
      _
    $region19: #{sian_attention_batched.1} parent=1 // pred_check_branch
      %65 = sbr.rel (0) target = $region21
    $region20: #{sian_attention_batched.1} parent=1 // pred_region
      _
    $region21: #{sian_attention_batched.1} parent=1 // pred_fallthru
      _
    // Predicated region
    $region22: #{sian_attention_batched.1} parent=1 // pred_check
      _
    $region23: #{sian_attention_batched.1} parent=1 // pred_check_branch
      %67 = sbr.rel (0) target = $region25
    $region24: #{sian_attention_batched.1} parent=1 // pred_region
      %s69 = ssub.s32 512, 512
      %70 = vsyncadd [#allocation8], %s69
      %s71 = sshll.u32 [#allocation9], 4
      %s72 = int_to_ptr.vmem [resolvable:$true] %s71
      %77 = dma.hbm_to_vmem [thread:$0]  %s5, 512, %s72, [#allocation8], 128, 128, 8
    $region25: #{sian_attention_batched.1} parent=1 // pred_fallthru
      _
    // Predicated region
    $region26: #{sian_attention_batched.1} parent=1 // pred_check
      _
    $region27: #{sian_attention_batched.1} parent=1 // pred_check_branch
      %79 = sbr.rel (0) target = $region29
    $region28: #{sian_attention_batched.1} parent=1 // pred_region
      _
    $region29: #{sian_attention_batched.1} parent=1 // pred_fallthru
      _
    // Predicated region
    $region30: #{sian_attention_batched.1} parent=1 // pred_check
      _
    $region31: #{sian_attention_batched.1} parent=1 // pred_check_branch
      %81 = sbr.rel (0) target = $region33
    $region32: #{sian_attention_batched.1} parent=1 // pred_region
      _
    $region33: #{sian_attention_batched.1} parent=1 // pred_fallthru
      _
    // Predicated region
    $region34: #{sian_attention_batched.1} parent=1 // pred_check
      _
    $region35: #{sian_attention_batched.1} parent=1 // pred_check_branch
      %83 = sbr.rel (0) target = $region37
    $region36: #{sian_attention_batched.1} parent=1 // pred_region
      %84 = dma.done [#allocation3], 2048
    $region37: #{sian_attention_batched.1} parent=1 // pred_fallthru
      _
    // Predicated region
    $region38: #{sian_attention_batched.1} parent=1 // pred_check
      _
    $region39: #{sian_attention_batched.1} parent=1 // pred_check_branch
      %86 = sbr.rel (0) target = $region41
    $region40: #{sian_attention_batched.1} parent=1 // pred_region
      %87 = dma.done [#allocation5], 256
    $region41: #{sian_attention_batched.1} parent=1 // pred_fallthru
      _
    // Predicated region
    $region42: #{sian_attention_batched.1} parent=1 // pred_check
      _
    $region43: #{sian_attention_batched.1} parent=1 // pred_check_branch
      %89 = sbr.rel (0) target = $region45
    $region44: #{sian_attention_batched.1} parent=1 // pred_region
      %90 = dma.done [#allocation5], 512
    $region45: #{sian_attention_batched.1} parent=1 // pred_fallthru
      _
    // Predicated region
    $region46: #{sian_attention_batched.1} parent=1 // pred_check
      _
    $region47: #{sian_attention_batched.1} parent=1 // pred_check_branch
      %92 = sbr.rel (0) target = $region49
    $region48: #{sian_attention_batched.1} parent=1 // pred_region
      %93 = dma.done [#allocation8], 512
    $region49: #{sian_attention_batched.1} parent=1 // pred_fallthru
      _
    // Predicated region
    $region50: #{sian_attention_batched.1} parent=1 // pred_check
      _
    $region51: #{sian_attention_batched.1} parent=1 // pred_check_branch
      %95 = sbr.rel (0) target = $region53
    $region52: #{sian_attention_batched.1} parent=1 // pred_region
      %96 = dma.done [#allocation8], 512
    $region53: #{sian_attention_batched.1} parent=1 // pred_fallthru
      _
    %v97 = vld [vmem:[#allocation4] sm:$0xff]
    %v98 = vld [vmem:[#allocation4 + $0x8] sm:$0xff]
    %v99 = vld [vmem:[#allocation7] sm:$0xff]
    %v100 = vld [vmem:[#allocation7 + $0x8] sm:$0xff]
    %v101 = vld [vmem:[#allocation7 + $0x10] sm:$0xff]
    %v102 = vld [vmem:[#allocation7 + $0x18] sm:$0xff]
    %v103 = vld [vmem:[%s4] sm:$0x1]
    %v105 = vlaneseq
    %v106 = vshrl.u32 %v105, 7
    %v107 = vsub.s32 0, %v106
    %v108 = vrot.slane %v103, %v107
    %vm110 = vcmask 261120
    %v112 = vsel %vm110, %v97, 0
    %v115 = vsel %vm110, %v98, 0
    %117 = vmatprep.subr.mxu0 0.0
    %118 = vmatpush1.msra.mxu0 %v99
    %119 = vmatprep.subr.mxu0 0.0
    %120 = vmatpush1.msra.mxu0 %v100
    %121 = vmatprep.subr.mxu0 0.0
    %122 = vmatpush1.msra.mxu0 %v101
    %123 = vmatprep.subr.mxu0 0.0
    %124 = vmatpush1.msra.mxu0 %v102
    %125 = vmatprep.subr.mxu0 0.0
    %126 = vmatpush1.msra.mxu0 0.0
    %127 = vmatprep.subr.mxu0 0.0
    %128 = vmatpush1.msra.mxu0 0.0
    %129 = vmatprep.subr.mxu0 0.0
    %130 = vmatpush1.msra.mxu0 0.0
    %131 = vmatprep.subr.mxu0 0.0
    %132 = vmatpush1.msra.mxu0 0.0
    %133 = vmatprep.subr.mxu0 0.0
    %134 = vmatpush1.msra.mxu0 0.0
    %135 = vmatprep.subr.mxu0 0.0
    %136 = vmatpush1.msra.mxu0 0.0
    %137 = vmatprep.subr.mxu0 0.0
    %138 = vmatpush1.msra.mxu0 0.0
    %139 = vmatprep.subr.mxu0 0.0
    %140 = vmatpush1.msra.mxu0 0.0
    %141 = vmatprep.subr.mxu0 0.0
    %142 = vmatpush1.msra.mxu0 0.0
    %143 = vmatprep.subr.mxu0 0.0
    %144 = vmatpush1.msra.mxu0 0.0
    %145 = vmatprep.subr.mxu0 0.0
    %146 = vmatpush1.msra.mxu0 0.0
    %147 = vmatprep.subr.mxu0 0.0
    %148 = vmatpush1.msra.mxu0 0.0
    %149 = vmatprep.subr.mxu0 0.0
    %150 = vmatpush1.msra.mxu0 0.0
    %151 = vmatprep.subr.mxu0 0.0
    %152 = vmatpush1.msra.mxu0 0.0
    %153 = vmatprep.subr.mxu0 0.0
    %154 = vmatpush1.msra.mxu0 0.0
    %155 = vmatprep.subr.mxu0 0.0
    %156 = vmatpush1.msra.mxu0 0.0
    %157 = vmatprep.subr.mxu0 0.0
    %158 = vmatpush1.msra.mxu0 0.0
    %159 = vmatprep.subr.mxu0 0.0
    %160 = vmatpush1.msra.mxu0 0.0
    %161 = vmatprep.subr.mxu0 0.0
    %162 = vmatpush1.msra.mxu0 0.0
    %163 = vmatprep.subr.mxu0 0.0
    %164 = vmatpush1.msra.mxu0 0.0
    %165 = vmatprep.subr.mxu0 0.0
    %166 = vmatpush1.msra.mxu0 0.0
    %167 = vmatprep.subr.mxu0 0.0
    %168 = vmatpush1.msra.mxu0 0.0
    %169 = vmatprep.subr.mxu0 0.0
    %170 = vmatpush1.msra.mxu0 0.0
    %171 = vmatprep.subr.mxu0 0.0
    %172 = vmatpush1.msra.mxu0 0.0
    %173 = vmatprep.subr.mxu0 0.0
    %174 = vmatpush1.msra.mxu0 0.0
    %175 = vmatprep.subr.mxu0 0.0
    %176 = vmatpush1.msra.mxu0 0.0
    %177 = vmatprep.subr.mxu0 0.0
    %178 = vmatpush1.msra.mxu0 0.0
    %179 = vmatprep.subr.mxu0 0.0
    %180 = vmatpush1.msra.mxu0 0.0
    %181 = vmatprep.mubr.f32.mxu0 0.0
    %182 = vmatmul.mubr.f32.gmra.mrb[0].mxu0 %v112
    %v183 = vpop.f32.mrb[0].mxu0
    %v184 = vadd.f32 %v108, %v183
    %v185 = vpop.f32.mrb[0].mxu0
    %186 = vmatprep.mubr.f32.mxu0 0.0
    %187 = vmatmul.mubr.f32.gmra.mrb[0].mxu0 %v115
    %v188 = vpop.f32.mrb[0].mxu0
    %v189 = vadd.f32 %v108, %v188
    %v190 = vpop.f32.mrb[0].mxu0
    %191 = vdwg.mxu0
    %v192 = vld [vmem:[#allocation2] sm:$0xff]
    %v193 = vld [vmem:[#allocation2 + $0x8] sm:$0xff]
    %v194 = vld [vmem:[#allocation2 + $0x10] sm:$0xff]
    %v195 = vld [vmem:[#allocation2 + $0x18] sm:$0xff]
    %v196 = vld [vmem:[#allocation2 + $0x20] sm:$0xff]
    %v197 = vld [vmem:[#allocation2 + $0x28] sm:$0xff]
    %v198 = vld [vmem:[#allocation2 + $0x30] sm:$0xff]
    %v199 = vld [vmem:[#allocation2 + $0x38] sm:$0xff]
    %v200 = vld [vmem:[#allocation2 + $0x40] sm:$0xff]
    %v201 = vld [vmem:[#allocation2 + $0x48] sm:$0xff]
    %v202 = vld [vmem:[#allocation2 + $0x50] sm:$0xff]
    %v203 = vld [vmem:[#allocation2 + $0x58] sm:$0xff]
    %v204 = vld [vmem:[#allocation2 + $0x60] sm:$0xff]
    %v205 = vld [vmem:[#allocation2 + $0x68] sm:$0xff]
    %v206 = vld [vmem:[#allocation2 + $0x70] sm:$0xff]
    %v207 = vld [vmem:[#allocation2 + $0x78] sm:$0xff]
    %v208 = vld [vmem:[#allocation6] sm:$0xff]
    %v209 = vld [vmem:[#allocation6 + $0x8] sm:$0xff]
    %v210 = vld [vmem:[#allocation6 + $0x10] sm:$0xff]
    %v211 = vld [vmem:[#allocation6 + $0x18] sm:$0xff]
    %v213 = vsel %vm110, %v192, 0
    %v216 = vsel %vm110, %v193, 0
    %v219 = vsel %vm110, %v194, 0
    %v222 = vsel %vm110, %v195, 0
    %v225 = vsel %vm110, %v196, 0
    %v228 = vsel %vm110, %v197, 0
    %v231 = vsel %vm110, %v198, 0
    %v234 = vsel %vm110, %v199, 0
    %v237 = vsel %vm110, %v200, 0
    %v240 = vsel %vm110, %v201, 0
    %v243 = vsel %vm110, %v202, 0
    %v246 = vsel %vm110, %v203, 0
    %v249 = vsel %vm110, %v204, 0
    %v252 = vsel %vm110, %v205, 0
    %v255 = vsel %vm110, %v206, 0
    %v258 = vsel %vm110, %v207, 0
    %260 = vmatprep.subr.mxu0 0.0
    %261 = vmatpush1.msra.mxu0 %v208
    %262 = vmatprep.subr.mxu0 0.0
    %263 = vmatpush1.msra.mxu0 %v209
    %264 = vmatprep.subr.mxu0 0.0
    %265 = vmatpush1.msra.mxu0 %v210
    %266 = vmatprep.subr.mxu0 0.0
    %267 = vmatpush1.msra.mxu0 %v211
    %268 = vmatprep.subr.mxu0 0.0
    %269 = vmatpush1.msra.mxu0 0.0
    %270 = vmatprep.subr.mxu0 0.0
    %271 = vmatpush1.msra.mxu0 0.0
    %272 = vmatprep.subr.mxu0 0.0
    %273 = vmatpush1.msra.mxu0 0.0
    %274 = vmatprep.subr.mxu0 0.0
    %275 = vmatpush1.msra.mxu0 0.0
    %276 = vmatprep.subr.mxu0 0.0
    %277 = vmatpush1.msra.mxu0 0.0
    %278 = vmatprep.subr.mxu0 0.0
    %279 = vmatpush1.msra.mxu0 0.0
    %280 = vmatprep.subr.mxu0 0.0
    %281 = vmatpush1.msra.mxu0 0.0
    %282 = vmatprep.subr.mxu0 0.0
    %283 = vmatpush1.msra.mxu0 0.0
    %284 = vmatprep.subr.mxu0 0.0
    %285 = vmatpush1.msra.mxu0 0.0
    %286 = vmatprep.subr.mxu0 0.0
    %287 = vmatpush1.msra.mxu0 0.0
    %288 = vmatprep.subr.mxu0 0.0
    %289 = vmatpush1.msra.mxu0 0.0
    %290 = vmatprep.subr.mxu0 0.0
    %291 = vmatpush1.msra.mxu0 0.0
    %292 = vmatprep.subr.mxu0 0.0
    %293 = vmatpush1.msra.mxu0 0.0
    %294 = vmatprep.subr.mxu0 0.0
    %295 = vmatpush1.msra.mxu0 0.0
    %296 = vmatprep.subr.mxu0 0.0
    %297 = vmatpush1.msra.mxu0 0.0
    %298 = vmatprep.subr.mxu0 0.0
    %299 = vmatpush1.msra.mxu0 0.0
    %300 = vmatprep.subr.mxu0 0.0
    %301 = vmatpush1.msra.mxu0 0.0
    %302 = vmatprep.subr.mxu0 0.0
    %303 = vmatpush1.msra.mxu0 0.0
    %304 = vmatprep.subr.mxu0 0.0
    %305 = vmatpush1.msra.mxu0 0.0
    %306 = vmatprep.subr.mxu0 0.0
    %307 = vmatpush1.msra.mxu0 0.0
    %308 = vmatprep.subr.mxu0 0.0
    %309 = vmatpush1.msra.mxu0 0.0
    %310 = vmatprep.subr.mxu0 0.0
    %311 = vmatpush1.msra.mxu0 0.0
    %312 = vmatprep.subr.mxu0 0.0
    %313 = vmatpush1.msra.mxu0 0.0
    %314 = vmatprep.subr.mxu0 0.0
    %315 = vmatpush1.msra.mxu0 0.0
    %316 = vmatprep.subr.mxu0 0.0
    %317 = vmatpush1.msra.mxu0 0.0
    %318 = vmatprep.subr.mxu0 0.0
    %319 = vmatpush1.msra.mxu0 0.0
    %320 = vmatprep.subr.mxu0 0.0
    %321 = vmatpush1.msra.mxu0 0.0
    %322 = vmatprep.subr.mxu0 0.0
    %323 = vmatpush1.msra.mxu0 0.0
    %324 = vmatprep.mubr.f32.mxu0 0.0
    %325 = vmatmul.mubr.f32.gmra.mrb[0].mxu0 %v213
    %v326 = vpop.f32.mrb[0].mxu0
    %v327 = vadd.f32 0.0, %v326
    %v328 = vpop.f32.mrb[0].mxu0
    %329 = vmatprep.mubr.f32.mxu0 0.0
    %330 = vmatmul.mubr.f32.gmra.mrb[0].mxu0 %v216
    %v331 = vpop.f32.mrb[0].mxu0
    %v332 = vadd.f32 0.0, %v331
    %v333 = vpop.f32.mrb[0].mxu0
    %334 = vmatprep.mubr.f32.mxu0 0.0
    %335 = vmatmul.mubr.f32.gmra.mrb[0].mxu0 %v219
    %v336 = vpop.f32.mrb[0].mxu0
    %v337 = vadd.f32 0.0, %v336
    %v338 = vpop.f32.mrb[0].mxu0
    %339 = vmatprep.mubr.f32.mxu0 0.0
    %340 = vmatmul.mubr.f32.gmra.mrb[0].mxu0 %v222
    %v341 = vpop.f32.mrb[0].mxu0
    %v342 = vadd.f32 0.0, %v341
    %v343 = vpop.f32.mrb[0].mxu0
    %344 = vmatprep.mubr.f32.mxu0 0.0
    %345 = vmatmul.mubr.f32.gmra.mrb[0].mxu0 %v225
    %v346 = vpop.f32.mrb[0].mxu0
    %v347 = vadd.f32 0.0, %v346
    %v348 = vpop.f32.mrb[0].mxu0
    %349 = vmatprep.mubr.f32.mxu0 0.0
    %350 = vmatmul.mubr.f32.gmra.mrb[0].mxu0 %v228
    %v351 = vpop.f32.mrb[0].mxu0
    %v352 = vadd.f32 0.0, %v351
    %v353 = vpop.f32.mrb[0].mxu0
    %354 = vmatprep.mubr.f32.mxu0 0.0
    %355 = vmatmul.mubr.f32.gmra.mrb[0].mxu0 %v231
    %v356 = vpop.f32.mrb[0].mxu0
    %v357 = vadd.f32 0.0, %v356
    %v358 = vpop.f32.mrb[0].mxu0
    %359 = vmatprep.mubr.f32.mxu0 0.0
    %360 = vmatmul.mubr.f32.gmra.mrb[0].mxu0 %v234
    %v361 = vpop.f32.mrb[0].mxu0
    %v362 = vadd.f32 0.0, %v361
    %v363 = vpop.f32.mrb[0].mxu0
    %364 = vmatprep.mubr.f32.mxu0 0.0
    %365 = vmatmul.mubr.f32.gmra.mrb[0].mxu0 %v237
    %v366 = vpop.f32.mrb[0].mxu0
    %v367 = vadd.f32 0.0, %v366
    %v368 = vpop.f32.mrb[0].mxu0
    %369 = vmatprep.mubr.f32.mxu0 0.0
    %370 = vmatmul.mubr.f32.gmra.mrb[0].mxu0 %v240
    %v371 = vpop.f32.mrb[0].mxu0
    %v372 = vadd.f32 0.0, %v371
    %v373 = vpop.f32.mrb[0].mxu0
    %374 = vmatprep.mubr.f32.mxu0 0.0
    %375 = vmatmul.mubr.f32.gmra.mrb[0].mxu0 %v243
    %v376 = vpop.f32.mrb[0].mxu0
    %v377 = vadd.f32 0.0, %v376
    %v378 = vpop.f32.mrb[0].mxu0
    %379 = vmatprep.mubr.f32.mxu0 0.0
    %380 = vmatmul.mubr.f32.gmra.mrb[0].mxu0 %v246
    %v381 = vpop.f32.mrb[0].mxu0
    %v382 = vadd.f32 0.0, %v381
    %v383 = vpop.f32.mrb[0].mxu0
    %384 = vmatprep.mubr.f32.mxu0 0.0
    %385 = vmatmul.mubr.f32.gmra.mrb[0].mxu0 %v249
    %v386 = vpop.f32.mrb[0].mxu0
    %v387 = vadd.f32 0.0, %v386
    %v388 = vpop.f32.mrb[0].mxu0
    %389 = vmatprep.mubr.f32.mxu0 0.0
    %390 = vmatmul.mubr.f32.gmra.mrb[0].mxu0 %v252
    %v391 = vpop.f32.mrb[0].mxu0
    %v392 = vadd.f32 0.0, %v391
    %v393 = vpop.f32.mrb[0].mxu0
    %394 = vmatprep.mubr.f32.mxu0 0.0
    %395 = vmatmul.mubr.f32.gmra.mrb[0].mxu0 %v255
    %v396 = vpop.f32.mrb[0].mxu0
    %v397 = vadd.f32 0.0, %v396
    %v398 = vpop.f32.mrb[0].mxu0
    %399 = vmatprep.mubr.f32.mxu0 0.0
    %400 = vmatmul.mubr.f32.gmra.mrb[0].mxu0 %v258
    %v401 = vpop.f32.mrb[0].mxu0
    %v402 = vadd.f32 0.0, %v401
    %v403 = vpop.f32.mrb[0].mxu0
    %404 = vdwg.mxu0
    %v407 = vcombine.high %v184, %v184
    %v409 = vunpack.c.l.s4 1966171168
    %v410 = vunpack.c.0.s8 %v409
    %v411 = vlaneseq
    %v412 = vshrl.u32 %v411, 7
    %v413 = vsub.s32 %v410, %v412
    %v414 = vrot.slane %v184, %v413
    %v416 = vunpack.c.l.s4 1966171168
    %v417 = vunpack.c.0.s8 %v416
    %v418 = vlaneseq
    %v419 = vshrl.u32 %v418, 7
    %v420 = vsub.s32 %v417, %v419
    %v421 = vrot.slane %v407, %v420
    %v422 = vcombine.high %v414, %v414
    %v423 = vcombine.high %v421, %v421
    %v425 = vunpack.c.l.s4 1966171168
    %v426 = vunpack.c.0.s8 %v425
    %v427 = vlaneseq
    %v428 = vshrl.u32 %v427, 7
    %v429 = vsub.s32 %v426, %v428
    %v430 = vrot.slane %v414, %v429
    %v432 = vunpack.c.l.s4 1966171168
    %v433 = vunpack.c.0.s8 %v432
    %v434 = vlaneseq
    %v435 = vshrl.u32 %v434, 7
    %v436 = vsub.s32 %v433, %v435
    %v437 = vrot.slane %v421, %v436
    %v439 = vunpack.c.l.s4 1966171168
    %v440 = vunpack.c.0.s8 %v439
    %v441 = vlaneseq
    %v442 = vshrl.u32 %v441, 7
    %v443 = vsub.s32 %v440, %v442
    %v444 = vrot.slane %v422, %v443
    %v446 = vunpack.c.l.s4 1966171168
    %v447 = vunpack.c.0.s8 %v446
    %v448 = vlaneseq
    %v449 = vshrl.u32 %v448, 7
    %v450 = vsub.s32 %v447, %v449
    %v451 = vrot.slane %v423, %v450
    %v452 = vcombine.high %v430, %v430
    %v453 = vcombine.high %v437, %v437
    %v454 = vcombine.high %v444, %v444
    %v455 = vcombine.high %v451, %v451
    %v456 = vcombine.high %v189, %v189
    %v458 = vunpack.c.l.s4 1966171168
    %v459 = vunpack.c.0.s8 %v458
    %v460 = vlaneseq
    %v461 = vshrl.u32 %v460, 7
    %v462 = vsub.s32 %v459, %v461
    %v463 = vrot.slane %v189, %v462
    %v465 = vunpack.c.l.s4 1966171168
    %v466 = vunpack.c.0.s8 %v465
    %v467 = vlaneseq
    %v468 = vshrl.u32 %v467, 7
    %v469 = vsub.s32 %v466, %v468
    %v470 = vrot.slane %v456, %v469
    %v471 = vcombine.high %v463, %v463
    %v472 = vcombine.high %v470, %v470
    %v474 = vunpack.c.l.s4 1966171168
    %v475 = vunpack.c.0.s8 %v474
    %v476 = vlaneseq
    %v477 = vshrl.u32 %v476, 7
    %v478 = vsub.s32 %v475, %v477
    %v479 = vrot.slane %v463, %v478
    %v481 = vunpack.c.l.s4 1966171168
    %v482 = vunpack.c.0.s8 %v481
    %v483 = vlaneseq
    %v484 = vshrl.u32 %v483, 7
    %v485 = vsub.s32 %v482, %v484
    %v486 = vrot.slane %v470, %v485
    %v488 = vunpack.c.l.s4 1966171168
    %v489 = vunpack.c.0.s8 %v488
    %v490 = vlaneseq
    %v491 = vshrl.u32 %v490, 7
    %v492 = vsub.s32 %v489, %v491
    %v493 = vrot.slane %v471, %v492
    %v495 = vunpack.c.l.s4 1966171168
    %v496 = vunpack.c.0.s8 %v495
    %v497 = vlaneseq
    %v498 = vshrl.u32 %v497, 7
    %v499 = vsub.s32 %v496, %v498
    %v500 = vrot.slane %v472, %v499
    %v501 = vcombine.high %v479, %v479
    %v502 = vcombine.high %v486, %v486
    %v503 = vcombine.high %v493, %v493
    %v504 = vcombine.high %v500, %v500
    %v505 = vlaneseq
    %v506 = vshrl.u32 %v505, 7
    %v507 = vsub.s32 0, %v506
    %v508 = vrot.slane %v430, %v507
    %v509 = vlaneseq
    %v510 = vshrl.u32 %v509, 7
    %v511 = vsub.s32 0, %v510
    %v512 = vrot.slane %v444, %v511
    %v513 = vlaneseq
    %v514 = vshrl.u32 %v513, 7
    %v515 = vsub.s32 0, %v514
    %v516 = vrot.slane %v452, %v515
    %v517 = vlaneseq
    %v518 = vshrl.u32 %v517, 7
    %v519 = vsub.s32 0, %v518
    %v520 = vrot.slane %v454, %v519
    %v521 = vlaneseq
    %v522 = vshrl.u32 %v521, 7
    %v523 = vsub.s32 0, %v522
    %v524 = vrot.slane %v437, %v523
    %v525 = vlaneseq
    %v526 = vshrl.u32 %v525, 7
    %v527 = vsub.s32 0, %v526
    %v528 = vrot.slane %v451, %v527
    %v529 = vlaneseq
    %v530 = vshrl.u32 %v529, 7
    %v531 = vsub.s32 0, %v530
    %v532 = vrot.slane %v453, %v531
    %v533 = vlaneseq
    %v534 = vshrl.u32 %v533, 7
    %v535 = vsub.s32 0, %v534
    %v536 = vrot.slane %v455, %v535
    %v537 = vlaneseq
    %v538 = vshrl.u32 %v537, 7
    %v539 = vsub.s32 0, %v538
    %v540 = vrot.slane %v479, %v539
    %v541 = vlaneseq
    %v542 = vshrl.u32 %v541, 7
    %v543 = vsub.s32 0, %v542
    %v544 = vrot.slane %v493, %v543
    %v545 = vlaneseq
    %v546 = vshrl.u32 %v545, 7
    %v547 = vsub.s32 0, %v546
    %v548 = vrot.slane %v501, %v547
    %v549 = vlaneseq
    %v550 = vshrl.u32 %v549, 7
    %v551 = vsub.s32 0, %v550
    %v552 = vrot.slane %v503, %v551
    %v553 = vlaneseq
    %v554 = vshrl.u32 %v553, 7
    %v555 = vsub.s32 0, %v554
    %v556 = vrot.slane %v486, %v555
    %v557 = vlaneseq
    %v558 = vshrl.u32 %v557, 7
    %v559 = vsub.s32 0, %v558
    %v560 = vrot.slane %v500, %v559
    %v561 = vlaneseq
    %v562 = vshrl.u32 %v561, 7
    %v563 = vsub.s32 0, %v562
    %v564 = vrot.slane %v502, %v563
    %v565 = vlaneseq
    %v566 = vshrl.u32 %v565, 7
    %v567 = vsub.s32 0, %v566
    %v568 = vrot.slane %v504, %v567
    %v585 = vadd.f32 %v327, %v508
    %v586 = vadd.f32 %v332, %v512
    %v587 = vadd.f32 %v337, %v516
    %v588 = vadd.f32 %v342, %v520
    %v589 = vadd.f32 %v347, %v524
    %v590 = vadd.f32 %v352, %v528
    %v591 = vadd.f32 %v357, %v532
    %v592 = vadd.f32 %v362, %v536
    %v593 = vadd.f32 %v367, %v540
    %v594 = vadd.f32 %v372, %v544
    %v595 = vadd.f32 %v377, %v548
    %v596 = vadd.f32 %v382, %v552
    %v597 = vadd.f32 %v387, %v556
    %v598 = vadd.f32 %v392, %v560
    %v599 = vadd.f32 %v397, %v564
    %v600 = vadd.f32 %v402, %v568
    %v601 = vmax.f32 %v585, 0.0
    %v602 = vmax.f32 %v586, 0.0
    %v603 = vmax.f32 %v587, 0.0
    %v604 = vmax.f32 %v588, 0.0
    %v605 = vmax.f32 %v589, 0.0
    %v606 = vmax.f32 %v590, 0.0
    %v607 = vmax.f32 %v591, 0.0
    %v608 = vmax.f32 %v592, 0.0
    %v609 = vmax.f32 %v593, 0.0
    %v610 = vmax.f32 %v594, 0.0
    %v611 = vmax.f32 %v595, 0.0
    %v612 = vmax.f32 %v596, 0.0
    %v613 = vmax.f32 %v597, 0.0
    %v614 = vmax.f32 %v598, 0.0
    %v615 = vmax.f32 %v599, 0.0
    %v616 = vmax.f32 %v600, 0.0
    %v617 = vld [vmem:[#allocation9] sm:$0xff]
    %v618 = vld [vmem:[#allocation9 + $0x8] sm:$0xff]
    %v619 = vld [vmem:[#allocation9 + $0x10] sm:$0xff]
    %v620 = vld [vmem:[#allocation9 + $0x18] sm:$0xff]
    %v621 = vld [vmem:[%s6] sm:$0x1]
    %v623 = vlaneseq
    %v624 = vshrl.u32 %v623, 7
    %v625 = vsub.s32 0, %v624
    %v626 = vrot.slane %v621, %v625
    %v629 = vsel %vm110, %v601, 0
    %v632 = vsel %vm110, %v602, 0
    %v635 = vsel %vm110, %v603, 0
    %v638 = vsel %vm110, %v604, 0
    %v641 = vsel %vm110, %v605, 0
    %v644 = vsel %vm110, %v606, 0
    %v647 = vsel %vm110, %v607, 0
    %v650 = vsel %vm110, %v608, 0
    %v653 = vsel %vm110, %v609, 0
    %v656 = vsel %vm110, %v610, 0
    %v659 = vsel %vm110, %v611, 0
    %v662 = vsel %vm110, %v612, 0
    %v665 = vsel %vm110, %v613, 0
    %v668 = vsel %vm110, %v614, 0
    %v671 = vsel %vm110, %v615, 0
    %v674 = vsel %vm110, %v616, 0
    %676 = vmatprep.subr.mxu0 0.0
    %677 = vmatpush1.msra.mxu0 %v617
    %678 = vmatprep.subr.mxu0 0.0
    %679 = vmatpush1.msra.mxu0 %v618
    %680 = vmatprep.subr.mxu0 0.0
    %681 = vmatpush1.msra.mxu0 %v619
    %682 = vmatprep.subr.mxu0 0.0
    %683 = vmatpush1.msra.mxu0 %v620
    %684 = vmatprep.subr.mxu0 0.0
    %685 = vmatpush1.msra.mxu0 0.0
    %686 = vmatprep.subr.mxu0 0.0
    %687 = vmatpush1.msra.mxu0 0.0
    %688 = vmatprep.subr.mxu0 0.0
    %689 = vmatpush1.msra.mxu0 0.0
    %690 = vmatprep.subr.mxu0 0.0
    %691 = vmatpush1.msra.mxu0 0.0
    %692 = vmatprep.subr.mxu0 0.0
    %693 = vmatpush1.msra.mxu0 0.0
    %694 = vmatprep.subr.mxu0 0.0
    %695 = vmatpush1.msra.mxu0 0.0
    %696 = vmatprep.subr.mxu0 0.0
    %697 = vmatpush1.msra.mxu0 0.0
    %698 = vmatprep.subr.mxu0 0.0
    %699 = vmatpush1.msra.mxu0 0.0
    %700 = vmatprep.subr.mxu0 0.0
    %701 = vmatpush1.msra.mxu0 0.0
    %702 = vmatprep.subr.mxu0 0.0
    %703 = vmatpush1.msra.mxu0 0.0
    %704 = vmatprep.subr.mxu0 0.0
    %705 = vmatpush1.msra.mxu0 0.0
    %706 = vmatprep.subr.mxu0 0.0
    %707 = vmatpush1.msra.mxu0 0.0
    %708 = vmatprep.subr.mxu0 0.0
    %709 = vmatpush1.msra.mxu0 0.0
    %710 = vmatprep.subr.mxu0 0.0
    %711 = vmatpush1.msra.mxu0 0.0
    %712 = vmatprep.subr.mxu0 0.0
    %713 = vmatpush1.msra.mxu0 0.0
    %714 = vmatprep.subr.mxu0 0.0
    %715 = vmatpush1.msra.mxu0 0.0
    %716 = vmatprep.subr.mxu0 0.0
    %717 = vmatpush1.msra.mxu0 0.0
    %718 = vmatprep.subr.mxu0 0.0
    %719 = vmatpush1.msra.mxu0 0.0
    %720 = vmatprep.subr.mxu0 0.0
    %721 = vmatpush1.msra.mxu0 0.0
    %722 = vmatprep.subr.mxu0 0.0
    %723 = vmatpush1.msra.mxu0 0.0
    %724 = vmatprep.subr.mxu0 0.0
    %725 = vmatpush1.msra.mxu0 0.0
    %726 = vmatprep.subr.mxu0 0.0
    %727 = vmatpush1.msra.mxu0 0.0
    %728 = vmatprep.subr.mxu0 0.0
    %729 = vmatpush1.msra.mxu0 0.0
    %730 = vmatprep.subr.mxu0 0.0
    %731 = vmatpush1.msra.mxu0 0.0
    %732 = vmatprep.subr.mxu0 0.0
    %733 = vmatpush1.msra.mxu0 0.0
    %734 = vmatprep.subr.mxu0 0.0
    %735 = vmatpush1.msra.mxu0 0.0
    %736 = vmatprep.subr.mxu0 0.0
    %737 = vmatpush1.msra.mxu0 0.0
    %738 = vmatprep.subr.mxu0 0.0
    %739 = vmatpush1.msra.mxu0 0.0
    %740 = vmatprep.mubr.f32.mxu0 0.0
    %741 = vmatmul.mubr.f32.gmra.mrb[0].mxu0 %v629
    %v742 = vpop.f32.mrb[0].mxu0
    %v743 = vadd.f32 %v626, %v742
    %v744 = vpop.f32.mrb[0].mxu0
    %745 = vmatprep.mubr.f32.mxu0 0.0
    %746 = vmatmul.mubr.f32.gmra.mrb[0].mxu0 %v632
    %v747 = vpop.f32.mrb[0].mxu0
    %v748 = vadd.f32 %v626, %v747
    %v749 = vpop.f32.mrb[0].mxu0
    %750 = vmatprep.mubr.f32.mxu0 0.0
    %751 = vmatmul.mubr.f32.gmra.mrb[0].mxu0 %v635
    %v752 = vpop.f32.mrb[0].mxu0
    %v753 = vadd.f32 %v626, %v752
    %v754 = vpop.f32.mrb[0].mxu0
    %755 = vmatprep.mubr.f32.mxu0 0.0
    %756 = vmatmul.mubr.f32.gmra.mrb[0].mxu0 %v638
    %v757 = vpop.f32.mrb[0].mxu0
    %v758 = vadd.f32 %v626, %v757
    %v759 = vpop.f32.mrb[0].mxu0
    %760 = vmatprep.mubr.f32.mxu0 0.0
    %761 = vmatmul.mubr.f32.gmra.mrb[0].mxu0 %v641
    %v762 = vpop.f32.mrb[0].mxu0
    %v763 = vadd.f32 %v626, %v762
    %v764 = vpop.f32.mrb[0].mxu0
    %765 = vmatprep.mubr.f32.mxu0 0.0
    %766 = vmatmul.mubr.f32.gmra.mrb[0].mxu0 %v644
    %v767 = vpop.f32.mrb[0].mxu0
    %v768 = vadd.f32 %v626, %v767
    %v769 = vpop.f32.mrb[0].mxu0
    %770 = vmatprep.mubr.f32.mxu0 0.0
    %771 = vmatmul.mubr.f32.gmra.mrb[0].mxu0 %v647
    %v772 = vpop.f32.mrb[0].mxu0
    %v773 = vadd.f32 %v626, %v772
    %v774 = vpop.f32.mrb[0].mxu0
    %775 = vmatprep.mubr.f32.mxu0 0.0
    %776 = vmatmul.mubr.f32.gmra.mrb[0].mxu0 %v650
    %v777 = vpop.f32.mrb[0].mxu0
    %v778 = vadd.f32 %v626, %v777
    %v779 = vpop.f32.mrb[0].mxu0
    %780 = vmatprep.mubr.f32.mxu0 0.0
    %781 = vmatmul.mubr.f32.gmra.mrb[0].mxu0 %v653
    %v782 = vpop.f32.mrb[0].mxu0
    %v783 = vadd.f32 %v626, %v782
    %v784 = vpop.f32.mrb[0].mxu0
    %785 = vmatprep.mubr.f32.mxu0 0.0
    %786 = vmatmul.mubr.f32.gmra.mrb[0].mxu0 %v656
    %v787 = vpop.f32.mrb[0].mxu0
    %v788 = vadd.f32 %v626, %v787
    %v789 = vpop.f32.mrb[0].mxu0
    %790 = vmatprep.mubr.f32.mxu0 0.0
    %791 = vmatmul.mubr.f32.gmra.mrb[0].mxu0 %v659
    %v792 = vpop.f32.mrb[0].mxu0
    %v793 = vadd.f32 %v626, %v792
    %v794 = vpop.f32.mrb[0].mxu0
    %795 = vmatprep.mubr.f32.mxu0 0.0
    %796 = vmatmul.mubr.f32.gmra.mrb[0].mxu0 %v662
    %v797 = vpop.f32.mrb[0].mxu0
    %v798 = vadd.f32 %v626, %v797
    %v799 = vpop.f32.mrb[0].mxu0
    %800 = vmatprep.mubr.f32.mxu0 0.0
    %801 = vmatmul.mubr.f32.gmra.mrb[0].mxu0 %v665
    %v802 = vpop.f32.mrb[0].mxu0
    %v803 = vadd.f32 %v626, %v802
    %v804 = vpop.f32.mrb[0].mxu0
    %805 = vmatprep.mubr.f32.mxu0 0.0
    %806 = vmatmul.mubr.f32.gmra.mrb[0].mxu0 %v668
    %v807 = vpop.f32.mrb[0].mxu0
    %v808 = vadd.f32 %v626, %v807
    %v809 = vpop.f32.mrb[0].mxu0
    %810 = vmatprep.mubr.f32.mxu0 0.0
    %811 = vmatmul.mubr.f32.gmra.mrb[0].mxu0 %v671
    %v812 = vpop.f32.mrb[0].mxu0
    %v813 = vadd.f32 %v626, %v812
    %v814 = vpop.f32.mrb[0].mxu0
    %815 = vmatprep.mubr.f32.mxu0 0.0
    %816 = vmatmul.mubr.f32.gmra.mrb[0].mxu0 %v674
    %v817 = vpop.f32.mrb[0].mxu0
    %v818 = vadd.f32 %v626, %v817
    %v819 = vpop.f32.mrb[0].mxu0
    %820 = vdwg.mxu0
    %v821 = vmax.f32 %v743, 0.0
    %v822 = vmax.f32 %v748, 0.0
    %v823 = vmax.f32 %v753, 0.0
    %v824 = vmax.f32 %v758, 0.0
    %v825 = vmax.f32 %v763, 0.0
    %v826 = vmax.f32 %v768, 0.0
    %v827 = vmax.f32 %v773, 0.0
    %v828 = vmax.f32 %v778, 0.0
    %v829 = vmax.f32 %v783, 0.0
    %v830 = vmax.f32 %v788, 0.0
    %v831 = vmax.f32 %v793, 0.0
    %v832 = vmax.f32 %v798, 0.0
    %v833 = vmax.f32 %v803, 0.0
    %v834 = vmax.f32 %v808, 0.0
    %v835 = vmax.f32 %v813, 0.0
    %v836 = vmax.f32 %v818, 0.0
    %v837 = vld [vmem:[%s7] sm:$0x1]
    %v839 = vlaneseq
    %v840 = vshrl.u32 %v839, 7
    %v841 = vsub.s32 0, %v840
    %v842 = vrot.slane %v837, %v841
    %v844 = vmul.f32 %v821, %v842
    %v845 = vmul.f32 %v822, %v842
    %v846 = vmul.f32 %v823, %v842
    %v847 = vmul.f32 %v824, %v842
    %v848 = vmul.f32 %v825, %v842
    %v849 = vmul.f32 %v826, %v842
    %v850 = vmul.f32 %v827, %v842
    %v851 = vmul.f32 %v828, %v842
    %v852 = vmul.f32 %v829, %v842
    %v853 = vmul.f32 %v830, %v842
    %v854 = vmul.f32 %v831, %v842
    %v855 = vmul.f32 %v832, %v842
    %v856 = vmul.f32 %v833, %v842
    %v857 = vmul.f32 %v834, %v842
    %v858 = vmul.f32 %v835, %v842
    %v859 = vmul.f32 %v836, %v842
    %v860 = vsel %vm110, %v844, 0.0
    %861 = vadd.xlane.f32.xlu0 %v860
    %v862 = vpop.xlane.xlu0 %861
    %v863 = vsel %vm110, %v845, 0.0
    %864 = vadd.xlane.f32.xlu0 %v863
    %v865 = vpop.xlane.xlu0 %864
    %v866 = vsel %vm110, %v846, 0.0
    %867 = vadd.xlane.f32.xlu0 %v866
    %v868 = vpop.xlane.xlu0 %867
    %v869 = vsel %vm110, %v847, 0.0
    %870 = vadd.xlane.f32.xlu0 %v869
    %v871 = vpop.xlane.xlu0 %870
    %v872 = vsel %vm110, %v848, 0.0
    %873 = vadd.xlane.f32.xlu0 %v872
    %v874 = vpop.xlane.xlu0 %873
    %v875 = vsel %vm110, %v849, 0.0
    %876 = vadd.xlane.f32.xlu0 %v875
    %v877 = vpop.xlane.xlu0 %876
    %v878 = vsel %vm110, %v850, 0.0
    %879 = vadd.xlane.f32.xlu0 %v878
    %v880 = vpop.xlane.xlu0 %879
    %v881 = vsel %vm110, %v851, 0.0
    %882 = vadd.xlane.f32.xlu0 %v881
    %v883 = vpop.xlane.xlu0 %882
    %v884 = vsel %vm110, %v852, 0.0
    %885 = vadd.xlane.f32.xlu0 %v884
    %v886 = vpop.xlane.xlu0 %885
    %v887 = vsel %vm110, %v853, 0.0
    %888 = vadd.xlane.f32.xlu0 %v887
    %v889 = vpop.xlane.xlu0 %888
    %v890 = vsel %vm110, %v854, 0.0
    %891 = vadd.xlane.f32.xlu0 %v890
    %v892 = vpop.xlane.xlu0 %891
    %v893 = vsel %vm110, %v855, 0.0
    %894 = vadd.xlane.f32.xlu0 %v893
    %v895 = vpop.xlane.xlu0 %894
    %v896 = vsel %vm110, %v856, 0.0
    %897 = vadd.xlane.f32.xlu0 %v896
    %v898 = vpop.xlane.xlu0 %897
    %v899 = vsel %vm110, %v857, 0.0
    %900 = vadd.xlane.f32.xlu0 %v899
    %v901 = vpop.xlane.xlu0 %900
    %v902 = vsel %vm110, %v858, 0.0
    %903 = vadd.xlane.f32.xlu0 %v902
    %v904 = vpop.xlane.xlu0 %903
    %v905 = vsel %vm110, %v859, 0.0
    %906 = vadd.xlane.f32.xlu0 %v905
    %v907 = vpop.xlane.xlu0 %906
    %v924 = vlaneseq
    %v925 = vand.u32 %v924, 127
    %v926 = vlaneseq
    %v927 = vshrl.u32 %v926, 7
    %v928 = vsub.s32 %v925, %v927
    %v929 = vrot.slane %v862, %v928
    %v930 = vlaneseq
    %v931 = vshrl.u32 %v930, 7
    %v932 = vsub.s32 %v925, %v931
    %v933 = vrot.slane %v865, %v932
    %v934 = vlaneseq
    %v935 = vshrl.u32 %v934, 7
    %v936 = vsub.s32 %v925, %v935
    %v937 = vrot.slane %v868, %v936
    %v938 = vlaneseq
    %v939 = vshrl.u32 %v938, 7
    %v940 = vsub.s32 %v925, %v939
    %v941 = vrot.slane %v871, %v940
    %v942 = vlaneseq
    %v943 = vshrl.u32 %v942, 7
    %v944 = vsub.s32 %v925, %v943
    %v945 = vrot.slane %v874, %v944
    %v946 = vlaneseq
    %v947 = vshrl.u32 %v946, 7
    %v948 = vsub.s32 %v925, %v947
    %v949 = vrot.slane %v877, %v948
    %v950 = vlaneseq
    %v951 = vshrl.u32 %v950, 7
    %v952 = vsub.s32 %v925, %v951
    %v953 = vrot.slane %v880, %v952
    %v954 = vlaneseq
    %v955 = vshrl.u32 %v954, 7
    %v956 = vsub.s32 %v925, %v955
    %v957 = vrot.slane %v883, %v956
    %v958 = vlaneseq
    %v959 = vshrl.u32 %v958, 7
    %v960 = vsub.s32 %v925, %v959
    %v961 = vrot.slane %v886, %v960
    %v962 = vlaneseq
    %v963 = vshrl.u32 %v962, 7
    %v964 = vsub.s32 %v925, %v963
    %v965 = vrot.slane %v889, %v964
    %v966 = vlaneseq
    %v967 = vshrl.u32 %v966, 7
    %v968 = vsub.s32 %v925, %v967
    %v969 = vrot.slane %v892, %v968
    %v970 = vlaneseq
    %v971 = vshrl.u32 %v970, 7
    %v972 = vsub.s32 %v925, %v971
    %v973 = vrot.slane %v895, %v972
    %v974 = vlaneseq
    %v975 = vshrl.u32 %v974, 7
    %v976 = vsub.s32 %v925, %v975
    %v977 = vrot.slane %v898, %v976
    %v978 = vlaneseq
    %v979 = vshrl.u32 %v978, 7
    %v980 = vsub.s32 %v925, %v979
    %v981 = vrot.slane %v901, %v980
    %v982 = vlaneseq
    %v983 = vshrl.u32 %v982, 7
    %v984 = vsub.s32 %v925, %v983
    %v985 = vrot.slane %v904, %v984
    %v986 = vlaneseq
    %v987 = vshrl.u32 %v986, 7
    %v988 = vsub.s32 %v925, %v987
    %v989 = vrot.slane %v907, %v988
    %vm990 = vcmask 1041409
    %v991 = vsel %vm990, %v933, %v929
    %vm992 = vcmask 1042434
    %v993 = vsel %vm992, %v937, %v991
    %vm994 = vcmask 1043459
    %v995 = vsel %vm994, %v941, %v993
    %vm996 = vcmask 1044484
    %v997 = vsel %vm996, %v945, %v995
    %vm998 = vcmask 1045509
    %v999 = vsel %vm998, %v949, %v997
    %vm1000 = vcmask 1046534
    %v1001 = vsel %vm1000, %v953, %v999
    %vm1002 = vcmask 1047559
    %v1003 = vsel %vm1002, %v957, %v1001
    %v1004 = vsel %vm990, %v965, %v961
    %v1005 = vsel %vm992, %v969, %v1004
    %v1006 = vsel %vm994, %v973, %v1005
    %v1007 = vsel %vm996, %v977, %v1006
    %v1008 = vsel %vm998, %v981, %v1007
    %v1009 = vsel %vm1000, %v985, %v1008
    %v1010 = vsel %vm1002, %v989, %v1009
    %vm1013 = vcmask 64512
    %v1014 = vsel %vm1013, %v1003, -inf
    %1015 = vmax.xlane.f32.xlu0 %v1014
    %v1016 = vpop.xlane.xlu0 %1015
    %v1017 = vsel %vm1013, %v1010, -inf
    %1018 = vmax.xlane.f32.xlu0 %v1017
    %v1019 = vpop.xlane.xlu0 %1018
    %v1022 = vlaneseq
    %v1023 = vshrl.u32 %v1022, 7
    %v1024 = vsub.s32 0, %v1023
    %v1025 = vrot.slane %v1016, %v1024
    %v1026 = vlaneseq
    %v1027 = vshrl.u32 %v1026, 7
    %v1028 = vsub.s32 1, %v1027
    %v1029 = vrot.slane %v1016, %v1028
    %v1030 = vlaneseq
    %v1031 = vshrl.u32 %v1030, 7
    %v1032 = vsub.s32 2, %v1031
    %v1033 = vrot.slane %v1016, %v1032
    %v1034 = vlaneseq
    %v1035 = vshrl.u32 %v1034, 7
    %v1036 = vsub.s32 3, %v1035
    %v1037 = vrot.slane %v1016, %v1036
    %v1038 = vlaneseq
    %v1039 = vshrl.u32 %v1038, 7
    %v1040 = vsub.s32 4, %v1039
    %v1041 = vrot.slane %v1016, %v1040
    %v1042 = vlaneseq
    %v1043 = vshrl.u32 %v1042, 7
    %v1044 = vsub.s32 5, %v1043
    %v1045 = vrot.slane %v1016, %v1044
    %v1046 = vlaneseq
    %v1047 = vshrl.u32 %v1046, 7
    %v1048 = vsub.s32 6, %v1047
    %v1049 = vrot.slane %v1016, %v1048
    %v1050 = vlaneseq
    %v1051 = vshrl.u32 %v1050, 7
    %v1052 = vsub.s32 7, %v1051
    %v1053 = vrot.slane %v1016, %v1052
    %v1054 = vlaneseq
    %v1055 = vshrl.u32 %v1054, 7
    %v1056 = vsub.s32 0, %v1055
    %v1057 = vrot.slane %v1019, %v1056
    %v1058 = vlaneseq
    %v1059 = vshrl.u32 %v1058, 7
    %v1060 = vsub.s32 1, %v1059
    %v1061 = vrot.slane %v1019, %v1060
    %v1062 = vlaneseq
    %v1063 = vshrl.u32 %v1062, 7
    %v1064 = vsub.s32 2, %v1063
    %v1065 = vrot.slane %v1019, %v1064
    %v1066 = vlaneseq
    %v1067 = vshrl.u32 %v1066, 7
    %v1068 = vsub.s32 3, %v1067
    %v1069 = vrot.slane %v1019, %v1068
    %v1070 = vlaneseq
    %v1071 = vshrl.u32 %v1070, 7
    %v1072 = vsub.s32 4, %v1071
    %v1073 = vrot.slane %v1019, %v1072
    %v1074 = vlaneseq
    %v1075 = vshrl.u32 %v1074, 7
    %v1076 = vsub.s32 5, %v1075
    %v1077 = vrot.slane %v1019, %v1076
    %v1078 = vlaneseq
    %v1079 = vshrl.u32 %v1078, 7
    %v1080 = vsub.s32 6, %v1079
    %v1081 = vrot.slane %v1019, %v1080
    %v1082 = vlaneseq
    %v1083 = vshrl.u32 %v1082, 7
    %v1084 = vsub.s32 7, %v1083
    %v1085 = vrot.slane %v1019, %v1084
    %v1102 = vsub.f32 %v862, %v1025
    %v1103 = vsub.f32 %v865, %v1029
    %v1104 = vsub.f32 %v868, %v1033
    %v1105 = vsub.f32 %v871, %v1037
    %v1106 = vsub.f32 %v874, %v1041
    %v1107 = vsub.f32 %v877, %v1045
    %v1108 = vsub.f32 %v880, %v1049
    %v1109 = vsub.f32 %v883, %v1053
    %v1110 = vsub.f32 %v886, %v1057
    %v1111 = vsub.f32 %v889, %v1061
    %v1112 = vsub.f32 %v892, %v1065
    %v1113 = vsub.f32 %v895, %v1069
    %v1114 = vsub.f32 %v898, %v1073
    %v1115 = vsub.f32 %v901, %v1077
    %v1116 = vsub.f32 %v904, %v1081
    %v1117 = vsub.f32 %v907, %v1085
    %v1118 = vmul.f32 %v1102, 1.442695
    %v1119 = vpow.pop %v1118
    %v1120 = vmul.f32 %v1103, 1.442695
    %v1121 = vpow.pop %v1120
    %v1122 = vmul.f32 %v1104, 1.442695
    %v1123 = vpow.pop %v1122
    %v1124 = vmul.f32 %v1105, 1.442695
    %v1125 = vpow.pop %v1124
    %v1126 = vmul.f32 %v1106, 1.442695
    %v1127 = vpow.pop %v1126
    %v1128 = vmul.f32 %v1107, 1.442695
    %v1129 = vpow.pop %v1128
    %v1130 = vmul.f32 %v1108, 1.442695
    %v1131 = vpow.pop %v1130
    %v1132 = vmul.f32 %v1109, 1.442695
    %v1133 = vpow.pop %v1132
    %v1134 = vmul.f32 %v1110, 1.442695
    %v1135 = vpow.pop %v1134
    %v1136 = vmul.f32 %v1111, 1.442695
    %v1137 = vpow.pop %v1136
    %v1138 = vmul.f32 %v1112, 1.442695
    %v1139 = vpow.pop %v1138
    %v1140 = vmul.f32 %v1113, 1.442695
    %v1141 = vpow.pop %v1140
    %v1142 = vmul.f32 %v1114, 1.442695
    %v1143 = vpow.pop %v1142
    %v1144 = vmul.f32 %v1115, 1.442695
    %v1145 = vpow.pop %v1144
    %v1146 = vmul.f32 %v1116, 1.442695
    %v1147 = vpow.pop %v1146
    %v1148 = vmul.f32 %v1117, 1.442695
    %v1149 = vpow.pop %v1148
    %1166 = vset.pattern.permute.xlu0 0
    %1167 = vperm.xlu0 %1166, %v1119
    %v1168 = vpop.permute.xlu0 %1167
    %1169 = vset.pattern.permute.xlu0 0
    %1170 = vperm.xlu0 %1169, %v1121
    %v1171 = vpop.permute.xlu0 %1170
    %1172 = vset.pattern.permute.xlu0 0
    %1173 = vperm.xlu0 %1172, %v1123
    %v1174 = vpop.permute.xlu0 %1173
    %1175 = vset.pattern.permute.xlu0 0
    %1176 = vperm.xlu0 %1175, %v1125
    %v1177 = vpop.permute.xlu0 %1176
    %1178 = vset.pattern.permute.xlu0 0
    %1179 = vperm.xlu0 %1178, %v1127
    %v1180 = vpop.permute.xlu0 %1179
    %1181 = vset.pattern.permute.xlu0 0
    %1182 = vperm.xlu0 %1181, %v1129
    %v1183 = vpop.permute.xlu0 %1182
    %1184 = vset.pattern.permute.xlu0 0
    %1185 = vperm.xlu0 %1184, %v1131
    %v1186 = vpop.permute.xlu0 %1185
    %1187 = vset.pattern.permute.xlu0 0
    %1188 = vperm.xlu0 %1187, %v1133
    %v1189 = vpop.permute.xlu0 %1188
    %1190 = vset.pattern.permute.xlu0 0
    %1191 = vperm.xlu0 %1190, %v1135
    %v1192 = vpop.permute.xlu0 %1191
    %1193 = vset.pattern.permute.xlu0 0
    %1194 = vperm.xlu0 %1193, %v1137
    %v1195 = vpop.permute.xlu0 %1194
    %1196 = vset.pattern.permute.xlu0 0
    %1197 = vperm.xlu0 %1196, %v1139
    %v1198 = vpop.permute.xlu0 %1197
    %1199 = vset.pattern.permute.xlu0 0
    %1200 = vperm.xlu0 %1199, %v1141
    %v1201 = vpop.permute.xlu0 %1200
    %1202 = vset.pattern.permute.xlu0 0
    %1203 = vperm.xlu0 %1202, %v1143
    %v1204 = vpop.permute.xlu0 %1203
    %1205 = vset.pattern.permute.xlu0 0
    %1206 = vperm.xlu0 %1205, %v1145
    %v1207 = vpop.permute.xlu0 %1206
    %1208 = vset.pattern.permute.xlu0 0
    %1209 = vperm.xlu0 %1208, %v1147
    %v1210 = vpop.permute.xlu0 %1209
    %1211 = vset.pattern.permute.xlu0 0
    %1212 = vperm.xlu0 %1211, %v1149
    %v1213 = vpop.permute.xlu0 %1212
    %v1214 = vlaneseq
    %v1215 = vshrl.u32 %v1214, 7
    %v1216 = vsub.s32 %v925, %v1215
    %v1217 = vrot.slane %v1168, %v1216
    %v1218 = vlaneseq
    %v1219 = vshrl.u32 %v1218, 7
    %v1220 = vsub.s32 %v925, %v1219
    %v1221 = vrot.slane %v1171, %v1220
    %v1222 = vlaneseq
    %v1223 = vshrl.u32 %v1222, 7
    %v1224 = vsub.s32 %v925, %v1223
    %v1225 = vrot.slane %v1174, %v1224
    %v1226 = vlaneseq
    %v1227 = vshrl.u32 %v1226, 7
    %v1228 = vsub.s32 %v925, %v1227
    %v1229 = vrot.slane %v1177, %v1228
    %v1230 = vlaneseq
    %v1231 = vshrl.u32 %v1230, 7
    %v1232 = vsub.s32 %v925, %v1231
    %v1233 = vrot.slane %v1180, %v1232
    %v1234 = vlaneseq
    %v1235 = vshrl.u32 %v1234, 7
    %v1236 = vsub.s32 %v925, %v1235
    %v1237 = vrot.slane %v1183, %v1236
    %v1238 = vlaneseq
    %v1239 = vshrl.u32 %v1238, 7
    %v1240 = vsub.s32 %v925, %v1239
    %v1241 = vrot.slane %v1186, %v1240
    %v1242 = vlaneseq
    %v1243 = vshrl.u32 %v1242, 7
    %v1244 = vsub.s32 %v925, %v1243
    %v1245 = vrot.slane %v1189, %v1244
    %v1246 = vlaneseq
    %v1247 = vshrl.u32 %v1246, 7
    %v1248 = vsub.s32 %v925, %v1247
    %v1249 = vrot.slane %v1192, %v1248
    %v1250 = vlaneseq
    %v1251 = vshrl.u32 %v1250, 7
    %v1252 = vsub.s32 %v925, %v1251
    %v1253 = vrot.slane %v1195, %v1252
    %v1254 = vlaneseq
    %v1255 = vshrl.u32 %v1254, 7
    %v1256 = vsub.s32 %v925, %v1255
    %v1257 = vrot.slane %v1198, %v1256
    %v1258 = vlaneseq
    %v1259 = vshrl.u32 %v1258, 7
    %v1260 = vsub.s32 %v925, %v1259
    %v1261 = vrot.slane %v1201, %v1260
    %v1262 = vlaneseq
    %v1263 = vshrl.u32 %v1262, 7
    %v1264 = vsub.s32 %v925, %v1263
    %v1265 = vrot.slane %v1204, %v1264
    %v1266 = vlaneseq
    %v1267 = vshrl.u32 %v1266, 7
    %v1268 = vsub.s32 %v925, %v1267
    %v1269 = vrot.slane %v1207, %v1268
    %v1270 = vlaneseq
    %v1271 = vshrl.u32 %v1270, 7
    %v1272 = vsub.s32 %v925, %v1271
    %v1273 = vrot.slane %v1210, %v1272
    %v1274 = vlaneseq
    %v1275 = vshrl.u32 %v1274, 7
    %v1276 = vsub.s32 %v925, %v1275
    %v1277 = vrot.slane %v1213, %v1276
    %v1278 = vsel %vm990, %v1221, %v1217
    %v1279 = vsel %vm992, %v1225, %v1278
    %v1280 = vsel %vm994, %v1229, %v1279
    %v1281 = vsel %vm996, %v1233, %v1280
    %v1282 = vsel %vm998, %v1237, %v1281
    %v1283 = vsel %vm1000, %v1241, %v1282
    %v1284 = vsel %vm1002, %v1245, %v1283
    %v1285 = vsel %vm990, %v1253, %v1249
    %v1286 = vsel %vm992, %v1257, %v1285
    %v1287 = vsel %vm994, %v1261, %v1286
    %v1288 = vsel %vm996, %v1265, %v1287
    %v1289 = vsel %vm998, %v1269, %v1288
    %v1290 = vsel %vm1000, %v1273, %v1289
    %v1291 = vsel %vm1002, %v1277, %v1290
    %v1294 = vsel %vm1013, %v1284, 0.0
    %1295 = vadd.xlane.f32.xlu0 %v1294
    %v1296 = vpop.xlane.xlu0 %1295
    %v1297 = vsel %vm1013, %v1291, 0.0
    %1298 = vadd.xlane.f32.xlu0 %v1297
    %v1299 = vpop.xlane.xlu0 %1298
    %v1300 = vrcp.pop %v1296
    %v1301 = vrcp.pop %v1299
    %v1304 = vlaneseq
    %v1305 = vshrl.u32 %v1304, 7
    %v1306 = vsub.s32 0, %v1305
    %v1307 = vrot.slane %v1300, %v1306
    %v1308 = vlaneseq
    %v1309 = vshrl.u32 %v1308, 7
    %v1310 = vsub.s32 1, %v1309
    %v1311 = vrot.slane %v1300, %v1310
    %v1312 = vlaneseq
    %v1313 = vshrl.u32 %v1312, 7
    %v1314 = vsub.s32 2, %v1313
    %v1315 = vrot.slane %v1300, %v1314
    %v1316 = vlaneseq
    %v1317 = vshrl.u32 %v1316, 7
    %v1318 = vsub.s32 3, %v1317
    %v1319 = vrot.slane %v1300, %v1318
    %v1320 = vlaneseq
    %v1321 = vshrl.u32 %v1320, 7
    %v1322 = vsub.s32 4, %v1321
    %v1323 = vrot.slane %v1300, %v1322
    %v1324 = vlaneseq
    %v1325 = vshrl.u32 %v1324, 7
    %v1326 = vsub.s32 5, %v1325
    %v1327 = vrot.slane %v1300, %v1326
    %v1328 = vlaneseq
    %v1329 = vshrl.u32 %v1328, 7
    %v1330 = vsub.s32 6, %v1329
    %v1331 = vrot.slane %v1300, %v1330
    %v1332 = vlaneseq
    %v1333 = vshrl.u32 %v1332, 7
    %v1334 = vsub.s32 7, %v1333
    %v1335 = vrot.slane %v1300, %v1334
    %v1336 = vlaneseq
    %v1337 = vshrl.u32 %v1336, 7
    %v1338 = vsub.s32 0, %v1337
    %v1339 = vrot.slane %v1301, %v1338
    %v1340 = vlaneseq
    %v1341 = vshrl.u32 %v1340, 7
    %v1342 = vsub.s32 1, %v1341
    %v1343 = vrot.slane %v1301, %v1342
    %v1344 = vlaneseq
    %v1345 = vshrl.u32 %v1344, 7
    %v1346 = vsub.s32 2, %v1345
    %v1347 = vrot.slane %v1301, %v1346
    %v1348 = vlaneseq
    %v1349 = vshrl.u32 %v1348, 7
    %v1350 = vsub.s32 3, %v1349
    %v1351 = vrot.slane %v1301, %v1350
    %v1352 = vlaneseq
    %v1353 = vshrl.u32 %v1352, 7
    %v1354 = vsub.s32 4, %v1353
    %v1355 = vrot.slane %v1301, %v1354
    %v1356 = vlaneseq
    %v1357 = vshrl.u32 %v1356, 7
    %v1358 = vsub.s32 5, %v1357
    %v1359 = vrot.slane %v1301, %v1358
    %v1360 = vlaneseq
    %v1361 = vshrl.u32 %v1360, 7
    %v1362 = vsub.s32 6, %v1361
    %v1363 = vrot.slane %v1301, %v1362
    %v1364 = vlaneseq
    %v1365 = vshrl.u32 %v1364, 7
    %v1366 = vsub.s32 7, %v1365
    %v1367 = vrot.slane %v1301, %v1366
    %v1384 = vmul.f32 %v1119, %v1307
    %v1385 = vmul.f32 %v1121, %v1311
    %v1386 = vmul.f32 %v1123, %v1315
    %v1387 = vmul.f32 %v1125, %v1319
    %v1388 = vmul.f32 %v1127, %v1323
    %v1389 = vmul.f32 %v1129, %v1327
    %v1390 = vmul.f32 %v1131, %v1331
    %v1391 = vmul.f32 %v1133, %v1335
    %v1392 = vmul.f32 %v1135, %v1339
    %v1393 = vmul.f32 %v1137, %v1343
    %v1394 = vmul.f32 %v1139, %v1347
    %v1395 = vmul.f32 %v1141, %v1351
    %v1396 = vmul.f32 %v1143, %v1355
    %v1397 = vmul.f32 %v1145, %v1359
    %v1398 = vmul.f32 %v1147, %v1363
    %v1399 = vmul.f32 %v1149, %v1367
    %1416 = vset.pattern.permute.xlu0 0
    %1417 = vperm.xlu0 %1416, %v1384
    %v1418 = vpop.permute.xlu0 %1417
    %1419 = vset.pattern.permute.xlu0 0
    %1420 = vperm.xlu0 %1419, %v1385
    %v1421 = vpop.permute.xlu0 %1420
    %1422 = vset.pattern.permute.xlu0 0
    %1423 = vperm.xlu0 %1422, %v1386
    %v1424 = vpop.permute.xlu0 %1423
    %1425 = vset.pattern.permute.xlu0 0
    %1426 = vperm.xlu0 %1425, %v1387
    %v1427 = vpop.permute.xlu0 %1426
    %1428 = vset.pattern.permute.xlu0 0
    %1429 = vperm.xlu0 %1428, %v1388
    %v1430 = vpop.permute.xlu0 %1429
    %1431 = vset.pattern.permute.xlu0 0
    %1432 = vperm.xlu0 %1431, %v1389
    %v1433 = vpop.permute.xlu0 %1432
    %1434 = vset.pattern.permute.xlu0 0
    %1435 = vperm.xlu0 %1434, %v1390
    %v1436 = vpop.permute.xlu0 %1435
    %1437 = vset.pattern.permute.xlu0 0
    %1438 = vperm.xlu0 %1437, %v1391
    %v1439 = vpop.permute.xlu0 %1438
    %1440 = vset.pattern.permute.xlu0 0
    %1441 = vperm.xlu0 %1440, %v1392
    %v1442 = vpop.permute.xlu0 %1441
    %1443 = vset.pattern.permute.xlu0 0
    %1444 = vperm.xlu0 %1443, %v1393
    %v1445 = vpop.permute.xlu0 %1444
    %1446 = vset.pattern.permute.xlu0 0
    %1447 = vperm.xlu0 %1446, %v1394
    %v1448 = vpop.permute.xlu0 %1447
    %1449 = vset.pattern.permute.xlu0 0
    %1450 = vperm.xlu0 %1449, %v1395
    %v1451 = vpop.permute.xlu0 %1450
    %1452 = vset.pattern.permute.xlu0 0
    %1453 = vperm.xlu0 %1452, %v1396
    %v1454 = vpop.permute.xlu0 %1453
    %1455 = vset.pattern.permute.xlu0 0
    %1456 = vperm.xlu0 %1455, %v1397
    %v1457 = vpop.permute.xlu0 %1456
    %1458 = vset.pattern.permute.xlu0 0
    %1459 = vperm.xlu0 %1458, %v1398
    %v1460 = vpop.permute.xlu0 %1459
    %1461 = vset.pattern.permute.xlu0 0
    %1462 = vperm.xlu0 %1461, %v1399
    %v1463 = vpop.permute.xlu0 %1462
    %v1464 = vlaneseq
    %v1465 = vshrl.u32 %v1464, 7
    %v1466 = vsub.s32 %v925, %v1465
    %v1467 = vrot.slane %v1418, %v1466
    %v1468 = vlaneseq
    %v1469 = vshrl.u32 %v1468, 7
    %v1470 = vsub.s32 %v925, %v1469
    %v1471 = vrot.slane %v1421, %v1470
    %v1472 = vlaneseq
    %v1473 = vshrl.u32 %v1472, 7
    %v1474 = vsub.s32 %v925, %v1473
    %v1475 = vrot.slane %v1424, %v1474
    %v1476 = vlaneseq
    %v1477 = vshrl.u32 %v1476, 7
    %v1478 = vsub.s32 %v925, %v1477
    %v1479 = vrot.slane %v1427, %v1478
    %v1480 = vlaneseq
    %v1481 = vshrl.u32 %v1480, 7
    %v1482 = vsub.s32 %v925, %v1481
    %v1483 = vrot.slane %v1430, %v1482
    %v1484 = vlaneseq
    %v1485 = vshrl.u32 %v1484, 7
    %v1486 = vsub.s32 %v925, %v1485
    %v1487 = vrot.slane %v1433, %v1486
    %v1488 = vlaneseq
    %v1489 = vshrl.u32 %v1488, 7
    %v1490 = vsub.s32 %v925, %v1489
    %v1491 = vrot.slane %v1436, %v1490
    %v1492 = vlaneseq
    %v1493 = vshrl.u32 %v1492, 7
    %v1494 = vsub.s32 %v925, %v1493
    %v1495 = vrot.slane %v1439, %v1494
    %v1496 = vlaneseq
    %v1497 = vshrl.u32 %v1496, 7
    %v1498 = vsub.s32 %v925, %v1497
    %v1499 = vrot.slane %v1442, %v1498
    %v1500 = vlaneseq
    %v1501 = vshrl.u32 %v1500, 7
    %v1502 = vsub.s32 %v925, %v1501
    %v1503 = vrot.slane %v1445, %v1502
    %v1504 = vlaneseq
    %v1505 = vshrl.u32 %v1504, 7
    %v1506 = vsub.s32 %v925, %v1505
    %v1507 = vrot.slane %v1448, %v1506
    %v1508 = vlaneseq
    %v1509 = vshrl.u32 %v1508, 7
    %v1510 = vsub.s32 %v925, %v1509
    %v1511 = vrot.slane %v1451, %v1510
    %v1512 = vlaneseq
    %v1513 = vshrl.u32 %v1512, 7
    %v1514 = vsub.s32 %v925, %v1513
    %v1515 = vrot.slane %v1454, %v1514
    %v1516 = vlaneseq
    %v1517 = vshrl.u32 %v1516, 7
    %v1518 = vsub.s32 %v925, %v1517
    %v1519 = vrot.slane %v1457, %v1518
    %v1520 = vlaneseq
    %v1521 = vshrl.u32 %v1520, 7
    %v1522 = vsub.s32 %v925, %v1521
    %v1523 = vrot.slane %v1460, %v1522
    %v1524 = vlaneseq
    %v1525 = vshrl.u32 %v1524, 7
    %v1526 = vsub.s32 %v925, %v1525
    %v1527 = vrot.slane %v1463, %v1526
    %v1528 = vsel %vm990, %v1471, %v1467
    %v1529 = vsel %vm992, %v1475, %v1528
    %v1530 = vsel %vm994, %v1479, %v1529
    %v1531 = vsel %vm996, %v1483, %v1530
    %v1532 = vsel %vm998, %v1487, %v1531
    %v1533 = vsel %vm1000, %v1491, %v1532
    %v1534 = vsel %vm1002, %v1495, %v1533
    %v1535 = vsel %vm990, %v1503, %v1499
    %v1536 = vsel %vm992, %v1507, %v1535
    %v1537 = vsel %vm994, %v1511, %v1536
    %v1538 = vsel %vm996, %v1515, %v1537
    %v1539 = vsel %vm998, %v1519, %v1538
    %v1540 = vsel %vm1000, %v1523, %v1539
    %v1541 = vsel %vm1002, %v1527, %v1540
    %1544 = vst.msk [vmem:[%s8] sm:$0xff] %vm1013, %v1534
    %1545 = vst.msk [vmem:[%s8 + $0x8] sm:$0xff] %vm1013, %v1541
    // Predicated region
    $region54: #{sian_attention_batched.1} parent=1 // pred_check
      _
    $region55: #{sian_attention_batched.1} parent=1 // pred_check_branch
      %1547 = sbr.rel (0) target = $region57
    $region56: #{sian_attention_batched.1} parent=1 // pred_region
      _
    $region57: #{sian_attention_batched.1} parent=1 // pred_fallthru
      _
    // Predicated region
    $region58: #{sian_attention_batched.1} parent=1 // pred_check
      _
    $region59: #{sian_attention_batched.1} parent=1 // pred_check_branch
      %1549 = sbr.rel (0) target = $region61
    $region60: #{sian_attention_batched.1} parent=1 // pred_region
      _
    $region61: #{sian_attention_batched.1} parent=1 // pred_fallthru
      _
    %1550 = vsyncpa [#allocation3], 1
    %1551 = vsyncpa [#allocation5], 1
    %1552 = vsyncpa [#allocation8], 1

</llo_original>
